<compile_context>
chip_gen: v5e
topology: v5e:2x2
jax: 0.10.0
libtpu: 0.0.40
codegen_flags: <defaults>
</compile_context>

<pallas_src>
import functools

import jax
import jax.numpy as jnp
from jax.experimental import pallas as pl
from jax.experimental.pallas import tpu as pltpu


def _cdiv(a, b):
    return -(-a // b)


def _round_up(x, m):
    return _cdiv(x, m) * m


def _pick_tile(dim, max_tile, align):
    """Largest tile <= max_tile, multiple of `align`, minimizing padding."""
    dim_a = _round_up(dim, align)
    if dim_a <= max_tile:
        return dim_a
    n_tiles = _cdiv(dim_a, max_tile)
    return _round_up(_cdiv(dim_a, n_tiles), align)


@functools.lru_cache(maxsize=None)
def _tile_config():
    """(tile_rows, tile_cols, tile_k, vmem_limit_bytes) derived per TPU generation."""
    vmem_bytes = None
    try:
        vmem_bytes = int(pltpu.get_tpu_info().vmem_capacity_bytes)
    except Exception:
        vmem_bytes = None
    if vmem_bytes is None:
        try:
            kind = jax.devices()[0].device_kind.lower()
            vmem_bytes = (64 if "v7" in kind else 128) * 1024 * 1024
        except Exception:
            vmem_bytes = 64 * 1024 * 1024
    if vmem_bytes >= 96 * 1024 * 1024:
        # v5e / v6e: 128 MiB VMEM -> bigger tiles, fewer grid steps.
        return 256, 2048, 1024, 64 * 1024 * 1024
    # v7x: 64 MiB VMEM per TensorCore -> keep double-buffered footprint small.
    return 256, 1024, 512, 40 * 1024 * 1024


# ----------------------------------------------------------------------------
# Pallas kernels: tiled matmul + bias + optional LeakyReLU, f32 accumulation
# ----------------------------------------------------------------------------
def _mm_bias_act_kernel(l_ref, r_ref, b_ref, o_ref, acc_ref, *, activate, leakiness):
    @pl.when(pl.program_id(2) == 0)
    def _init():
        acc_ref[...] = jnp.zeros_like(acc_ref)

    acc_ref[...] += jnp.dot(l_ref[...], r_ref[...],
                            preferred_element_type=jnp.float32)

    @pl.when(pl.program_id(2) == pl.num_programs(2) - 1)
    def _finalize():
        acc = acc_ref[...] + b_ref[...].astype(jnp.float32)
        if activate:
            acc = jnp.where(acc >= 0.0, acc, leakiness * acc)   # LeakyReLU in f32
        o_ref[...] = acc.astype(o_ref.dtype)


def _mm_bias_act_single_kernel(l_ref, r_ref, b_ref, o_ref, *, activate, leakiness):
    # Fast path: whole K reduction in one grid step -> no VMEM accumulator needed.
    acc = jnp.dot(l_ref[...], r_ref[...], preferred_element_type=jnp.float32)
    acc = acc + b_ref[...].astype(jnp.float32)
    if activate:
        acc = jnp.where(acc >= 0.0, acc, leakiness * acc)
    o_ref[...] = acc.astype(o_ref.dtype)


def fused_matmul(l, r, bias, *, bias_axis, activate=True, leakiness=0.01,
                 out_dtype=jnp.bfloat16):
    """out = act(l @ r + bias).   l:(M,K)  r:(K,N).

    bias_axis=0 -> bias has one entry per output row    (length M)
    bias_axis=1 -> bias has one entry per output column (length N)
    Operands are fed to the MXU as bf16, accumulation/bias/activation in f32.
    Dims that fit within a tile ceiling use full-dim blocks (no HBM padding).
    """
    M, K = l.shape
    K2, N = r.shape
    assert K == K2
    tile_rows, tile_cols, tile_k, vmem_limit = _tile_config()

    # Full-dim blocks when a dim fits inside the ceiling -> no padding, no slicing.
    tm = M if M <= tile_rows else _pick_tile(M, tile_rows, 8)
    tn = N if N <= tile_cols else _pick_tile(N, tile_cols, 128)
    tk = K if K <= tile_k else _pick_tile(K, tile_k, 128)
    Mp, Np, Kp = _round_up(M, tm), _round_up(N, tn), _round_up(K, tk)

    # v7x megacore: if there is only one parallel block, split N (only when it
    # introduces no padding) so both TensorCores get work.
    if Mp // tm == 1 and Np // tn == 1 and N >= 256 and N % 256 == 0:
        tn = N // 2

    if l.dtype != jnp.bfloat16:
        l = l.astype(jnp.bfloat16)
    if r.dtype != jnp.bfloat16:
        r = r.astype(jnp.bfloat16)
    if (Mp, Kp) != (M, K):
        l = jnp.pad(l, ((0, Mp - M), (0, Kp - K)))
    if (Kp, Np) != (K, N):
        r = jnp.pad(r, ((0, Kp - K), (0, Np - N)))

    bias = bias.astype(jnp.float32)
    if bias_axis == 0:
        b2 = bias.reshape(M, 1)
        if Mp != M:
            b2 = jnp.pad(b2, ((0, Mp - M), (0, 0)))
    else:
        b2 = bias.reshape(1, N)
        if Np != N:
            b2 = jnp.pad(b2, ((0, 0), (0, Np - N)))

    nk = Kp // tk
    if nk == 1:
        b_spec = (pl.BlockSpec((tm, 1), lambda i, j: (i, 0)) if bias_axis == 0
                  else pl.BlockSpec((1, tn), lambda i, j: (0, j)))
        out = pl.pallas_call(
            functools.partial(_mm_bias_act_single_kernel, activate=activate,
                              leakiness=leakiness),
            out_shape=jax.ShapeDtypeStruct((Mp, Np), out_dtype),
            grid=(Mp // tm, Np // tn),
            in_specs=[
                pl.BlockSpec((tm, Kp), lambda i, j: (i, 0)),
                pl.BlockSpec((Kp, tn), lambda i, j: (0, j)),
                b_spec,
            ],
            out_specs=pl.BlockSpec((tm, tn), lambda i, j: (i, j)),
            compiler_params=pltpu.CompilerParams(
                dimension_semantics=("parallel", "parallel"),
                vmem_limit_bytes=vmem_limit),
        )(l, r, b2)
    else:
        b_spec = (pl.BlockSpec((tm, 1), lambda i, j, k: (i, 0)) if bias_axis == 0
                  else pl.BlockSpec((1, tn), lambda i, j, k: (0, j)))
        out = pl.pallas_call(
            functools.partial(_mm_bias_act_kernel, activate=activate,
                              leakiness=leakiness),
            out_shape=jax.ShapeDtypeStruct((Mp, Np), out_dtype),
            grid=(Mp // tm, Np // tn, nk),
            in_specs=[
                pl.BlockSpec((tm, tk), lambda i, j, k: (i, k)),
                pl.BlockSpec((tk, tn), lambda i, j, k: (k, j)),
                b_spec,
            ],
            out_specs=pl.BlockSpec((tm, tn), lambda i, j, k: (i, j)),
            scratch_shapes=[pltpu.VMEM((tm, tn), jnp.float32)],
            compiler_params=pltpu.CompilerParams(
                dimension_semantics=("parallel", "parallel", "arbitrary"),
                vmem_limit_bytes=vmem_limit),
        )(l, r, b2)

    if (Mp, Np) != (M, N):
        out = out[:M, :N]
    return out


# ----------------------------------------------------------------------------
# Conv layers in channel-major (C, B, H, W) layout
# ----------------------------------------------------------------------------
def conv2d_s2_k3(x, wmat, bias, *, activate, leakiness, out_dtype):
    """Conv2d(k=3, stride=2, padding=1).  x:(Cin,B,H,W), wmat:(Cout,Cin*9)."""
    Cin, B, H, W = x.shape
    Cout = wmat.shape[0]
    Ho, Wo = (H - 1) // 2 + 1, (W - 1) // 2 + 1
    xp = jnp.pad(x, ((0, 0), (0, 0), (1, 1), (1, 1)))
    # A^T rows ordered (ci, di, dj) to match wmat = w.reshape(Cout, Cin*9).
    # TODO(synk): this im2col slab is still materialized by XLA (see header note).
    taps = [xp[:, :, di:di + 2 * Ho - 1:2, dj:dj + 2 * Wo - 1:2]
            for di in range(3) for dj in range(3)]
    at = jnp.stack(taps, axis=1).reshape(Cin * 9, B * Ho * Wo)
    out = fused_matmul(wmat, at, bias, bias_axis=0, activate=activate,
                       leakiness=leakiness, out_dtype=out_dtype)
    return out.reshape(Cout, B, Ho, Wo)


def conv_transpose2d_s2_k3(x, wmerged, bias4, *, activate, leakiness, out_dtype):
    """ConvTranspose2d(k=3, stride=2, padding=1, output_padding=1) via 4-phase
    sub-pixel decomposition, all phases merged into ONE matmul.
    x:(Cin,B,H,W), wmerged:(4*Cout, 4*Cin) -> (Cout,B,2H,2W)."""
    Cin, B, H, W = x.shape
    Cout = wmerged.shape[0] // 4
    M = B * H * W
    xf = x.reshape(Cin, M)
    xr = jnp.pad(x, ((0, 0), (0, 0), (0, 0), (0, 1)))[:, :, :, 1:].reshape(Cin, M)
    xd = jnp.pad(x, ((0, 0), (0, 0), (0, 1), (0, 0)))[:, :, 1:, :].reshape(Cin, M)
    xdr = jnp.pad(x, ((0, 0), (0, 0), (0, 1), (0, 1)))[:, :, 1:, 1:].reshape(Cin, M)
    a = jnp.concatenate([xdr, xd, xr, xf], axis=0)            # (4*Cin, M)
    out = fused_matmul(wmerged, a, bias4, bias_axis=0, activate=activate,
                       leakiness=leakiness, out_dtype=out_dtype)  # (4*Cout, M)
    # Interleave: rows [p00; p01; p10; p11] -> out[c, b, 2h+r, 2w+c_phase]
    o6 = out.reshape(2, 2, Cout, B, H, W)
    return jnp.transpose(o6, (2, 3, 4, 0, 5, 1)).reshape(Cout, B, 2 * H, 2 * W)


# ----------------------------------------------------------------------------
# Parameter construction (deterministic, synthetic), BN folding, weight packing
# ----------------------------------------------------------------------------
def fold_bn(w, b, gamma, beta, mean, var, *, eps=1e-5, channel_axis=0):
    scale = gamma / jnp.sqrt(var + eps)
    shape = [1] * w.ndim
    shape[channel_axis] = -1
    return w * scale.reshape(shape), (b - mean) * scale + beta


def _encoder_matmul_weights(w):
    # w: (Cout, Cin, 3, 3) -> (Cout, Cin*9) bf16, matches A^T row order (ci, di, dj)
    return w.reshape(w.shape[0], -1).astype(jnp.bfloat16)


def _decoder_merged_weights(w):
    # w: (Cin, Cout, 3, 3) PyTorch ConvTranspose layout -> merged (4*Cout, 4*Cin)
    # phase matrix; slab column-block order is [xdr, xd, xr, xf].
    Cin, Cout = w.shape[0], w.shape[1]

    def t(kh, kw):
        return w[:, :, kh, kw].T                      # (Cout, Cin)

    z = jnp.zeros((Cout, Cin), w.dtype)
    w00 = jnp.concatenate([z, z, z, t(1, 1)], axis=1)                      # even h, even w
    w01 = jnp.concatenate([z, z, t(1, 0), t(1, 2)], axis=1)                # even h, odd  w
    w10 = jnp.concatenate([z, t(0, 1), z, t(2, 1)], axis=1)                # odd  h, even w
    w11 = jnp.concatenate([t(0, 0), t(0, 2), t(2, 0), t(2, 2)], axis=1)    # odd  h, odd  w
    return jnp.concatenate([w00, w01, w10, w11], axis=0).astype(jnp.bfloat16)


def init_params(key, *, input_channel, input_res, first_output_channel, depth,
                feature_vector_size):
    d = depth + 1
    ch = [input_channel, first_output_channel]
    for _ in range(2, d):
        ch.append(ch[-1] * 2)
    inv_ch = ch[::-1]
    bottom_res = input_res // 2 ** (d - 1)
    flat = ch[-1] * bottom_res * bottom_res

    def nrm(k, shape, scale=0.1):
        return scale * jax.random.normal(k, shape, jnp.float32)

    keys = iter(jax.random.split(key, 8 * d + 8))
    params = {'encoder': [], 'decoder': [], 'bottleneck': {}}

    for i in range(d - 1):
        cin, cout = ch[i], ch[i + 1]
        w = nrm(next(keys), (cout, cin, 3, 3))
        b = nrm(next(keys), (cout,))
        gamma = 1.0 + 0.05 * jax.random.normal(next(keys), (cout,), jnp.float32)
        beta = nrm(next(keys), (cout,), 0.05)
        w, b = fold_bn(w, b, gamma, beta, jnp.zeros((cout,)), jnp.ones((cout,)),
                       channel_axis=0)
        params['encoder'].append({'wmat': _encoder_matmul_weights(w),
                                  'b': b.astype(jnp.float32)})

    params['bottleneck'] = {
        'w1': nrm(next(keys), (flat, feature_vector_size)).astype(jnp.bfloat16),
        'b1': nrm(next(keys), (feature_vector_size,)).astype(jnp.float32),
        'w2': nrm(next(keys), (feature_vector_size, flat)).astype(jnp.bfloat16),
        'b2': nrm(next(keys), (flat,)).astype(jnp.float32),
    }

    for i in range(d - 1):
        cin, cout = inv_ch[i], inv_ch[i + 1]
        w = nrm(next(keys), (cin, cout, 3, 3))
        b = nrm(next(keys), (cout,))
        if i < d - 2:     # last decoder stage: plain conv-transpose (no BN/act)
            gamma = 1.0 + 0.05 * jax.random.normal(next(keys), (cout,), jnp.float32)
            beta = nrm(next(keys), (cout,), 0.05)
            w, b = fold_bn(w, b, gamma, beta, jnp.zeros((cout,)), jnp.ones((cout,)),
                           channel_axis=1)
        params['decoder'].append({'wmerged': _decoder_merged_weights(w),
                                  'b4': jnp.tile(b.astype(jnp.float32), 4)})
    return params


# ----------------------------------------------------------------------------
# Forward pass (NCHW in / NCHW out, channel-major internally)
# ----------------------------------------------------------------------------
def conv_autoencoder_forward(x_nchw, params, *, leakiness=0.01):
    x = jnp.transpose(x_nchw.astype(jnp.bfloat16), (1, 0, 2, 3))   # (C,B,H,W)

    for p in params['encoder']:
        x = conv2d_s2_k3(x, p['wmat'], p['b'], activate=True,
                         leakiness=leakiness, out_dtype=jnp.bfloat16)

    # bottleneck: flatten exactly like x.view(B, -1) on an NCHW tensor
    C, B, H, W = x.shape
    h = jnp.transpose(x, (1, 0, 2, 3)).reshape(B, C * H * W)
    bn = params['bottleneck']
    h = fused_matmul(h, bn['w1'], bn['b1'], bias_axis=1, activate=True,
                     leakiness=leakiness, out_dtype=jnp.bfloat16)
    h = fused_matmul(h, bn['w2'], bn['b2'], bias_axis=1, activate=True,
                     leakiness=leakiness, out_dtype=jnp.bfloat16)
    x = jnp.transpose(h.reshape(B, C, H, W), (1, 0, 2, 3))

    n = len(params['decoder'])
    for i, p in enumerate(params['decoder']):
        last = (i == n - 1)
        x = conv_transpose2d_s2_k3(
            x, p['wmerged'], p['b4'], activate=not last, leakiness=leakiness,
            out_dtype=jnp.float32 if last else jnp.bfloat16)

    return jnp.transpose(x, (1, 0, 2, 3))                          # back to NCHW


# ----------------------------------------------------------------------------
if __name__ == "__main__":
    key = jax.random.PRNGKey(0)
    kp, kx = jax.random.split(key)

    # small config: channels [2,4,8], bottom_res=4, flat=128, neck=32
    cfg = dict(input_channel=2, input_res=16, first_output_channel=4,
               depth=2, feature_vector_size=32)

    params = init_params(kp, **cfg)
    x = jax.random.normal(kx, (2, cfg['input_channel'], cfg['input_res'],
                               cfg['input_res']), jnp.float32)

    fwd = jax.jit(functools.partial(conv_autoencoder_forward, leakiness=0.01))
    out = jax.block_until_ready(fwd(x, params))

    assert out.shape == x.shape, f"expected {x.shape}, got {out.shape}"
    assert out.dtype == jnp.float32
    assert jnp.all(jnp.isfinite(out))
    print("KERNEL_OK")
</pallas_src>

<mosaic_0001>
module attributes {stable_mosaic.version = 11 : i64} {
  func.func @_mm_bias_act_single_kernel(%arg0: i32, %arg1: i32, %arg2: memref<4x18xbf16, #tpu.memory_space<vmem>>, %arg3: memref<18x128xbf16, #tpu.memory_space<vmem>>, %arg4: memref<4x1xf32, #tpu.memory_space<vmem>>, %arg5: memref<4x128xbf16, #tpu.memory_space<vmem>>) attributes {dimension_semantics = [#tpu.dimension_semantics<parallel>, #tpu.dimension_semantics<parallel>], iteration_bounds = array<i64: 1, 1>, scalar_prefetch = 0 : i64, scratch_operands = 0 : i64, tpu.core_type = #tpu.core_type<tc>, window_params = [{transform_indices = @transform_0, window_bounds = array<i64: 4, 18>}, {transform_indices = @transform_1, window_bounds = array<i64: 18, 128>}, {transform_indices = @transform_2, window_bounds = array<i64: 4, 1>}, {transform_indices = @transform_3, window_bounds = array<i64: 4, 128>}]} {
    %c0 = arith.constant 0 : index
    %c0_0 = arith.constant 0 : index
    %0 = vector.load %arg2[%c0, %c0_0] : memref<4x18xbf16, #tpu.memory_space<vmem>>, vector<4x18xbf16>
    %c0_1 = arith.constant 0 : index
    %c0_2 = arith.constant 0 : index
    %1 = vector.load %arg3[%c0_1, %c0_2] : memref<18x128xbf16, #tpu.memory_space<vmem>>, vector<18x128xbf16>
    %cst = arith.constant dense<0.000000e+00> : vector<4x128xf32>
    %2 = tpu.matmul %0, %1, %cst {dimension_numbers = #tpu.dot_dimension_numbers<[1], [0], [0], [1], [0, 0, 1, 1], [], []>} : vector<4x18xbf16>, vector<18x128xbf16>, vector<4x128xf32> -> vector<4x128xf32>
    %c0_3 = arith.constant 0 : index
    %c0_4 = arith.constant 0 : index
    %3 = vector.load %arg4[%c0_3, %c0_4] : memref<4x1xf32, #tpu.memory_space<vmem>>, vector<4x1xf32>
    %4 = vector.broadcast %3 : vector<4x1xf32> to vector<4x128xf32>
    %5 = arith.addf %2, %4 : vector<4x128xf32>
    %cst_5 = arith.constant 0.000000e+00 : f32
    %6 = vector.broadcast %cst_5 : f32 to vector<4x128xf32>
    %7 = arith.cmpf oge, %5, %6 : vector<4x128xf32>
    %cst_6 = arith.constant 0.00999999977 : f32
    %8 = vector.broadcast %cst_6 : f32 to vector<4x128xf32>
    %9 = arith.mulf %8, %5 : vector<4x128xf32>
    %10 = arith.select %7, %5, %9 : vector<4x128xi1>, vector<4x128xf32>
    %11 = arith.truncf %10 : vector<4x128xf32> to vector<4x128xbf16>
    %c0_7 = arith.constant 0 : index
    %c0_8 = arith.constant 0 : index
    %12 = vector.load %arg5[%c0_7, %c0_8] : memref<4x128xbf16, #tpu.memory_space<vmem>>, vector<4x128xbf16>
    tpu.vector_store %arg5[%c0_7, %c0_8], %11 {strides = array<i32>} : memref<4x128xbf16, #tpu.memory_space<vmem>>, vector<4x128xbf16>,
    return
  }
  func.func @transform_0(%arg0: i32, %arg1: i32) -> (i32, i32) {
    %c0_i32 = arith.constant 0 : i32
    %c0_i32_0 = arith.constant 0 : i32
    return %arg0, %c0_i32 : i32, i32
  }
  func.func @transform_1(%arg0: i32, %arg1: i32) -> (i32, i32) {
    %c0_i32 = arith.constant 0 : i32
    %c0_i32_0 = arith.constant 0 : i32
    return %c0_i32, %arg1 : i32, i32
  }
  func.func @transform_2(%arg0: i32, %arg1: i32) -> (i32, i32) {
    %c0_i32 = arith.constant 0 : i32
    %c0_i32_0 = arith.constant 0 : i32
    return %arg0, %c0_i32 : i32, i32
  }
  func.func @transform_3(%arg0: i32, %arg1: i32) -> (i32, i32) {
    %c0_i32 = arith.constant 0 : i32
    return %arg0, %arg1 : i32, i32
  }
}

module attributes {stable_mosaic.version = 11 : i64} {
  func.func @_mm_bias_act_single_kernel(%arg0: i32, %arg1: i32, %arg2: memref<8x36xbf16, #tpu.memory_space<vmem>>, %arg3: memref<36x32xbf16, #tpu.memory_space<vmem>>, %arg4: memref<8x1xf32, #tpu.memory_space<vmem>>, %arg5: memref<8x32xbf16, #tpu.memory_space<vmem>>) attributes {dimension_semantics = [#tpu.dimension_semantics<parallel>, #tpu.dimension_semantics<parallel>], iteration_bounds = array<i64: 1, 1>, scalar_prefetch = 0 : i64, scratch_operands = 0 : i64, tpu.core_type = #tpu.core_type<tc>, window_params = [{transform_indices = @transform_0, window_bounds = array<i64: 8, 36>}, {transform_indices = @transform_1, window_bounds = array<i64: 36, 32>}, {transform_indices = @transform_2, window_bounds = array<i64: 8, 1>}, {transform_indices = @transform_3, window_bounds = array<i64: 8, 32>}]} {
    %c0 = arith.constant 0 : index
    %c0_0 = arith.constant 0 : index
    %0 = vector.load %arg2[%c0, %c0_0] : memref<8x36xbf16, #tpu.memory_space<vmem>>, vector<8x36xbf16>
    %c0_1 = arith.constant 0 : index
    %c0_2 = arith.constant 0 : index
    %1 = vector.load %arg3[%c0_1, %c0_2] : memref<36x32xbf16, #tpu.memory_space<vmem>>, vector<36x32xbf16>
    %cst = arith.constant dense<0.000000e+00> : vector<8x32xf32>
    %2 = tpu.matmul %0, %1, %cst {dimension_numbers = #tpu.dot_dimension_numbers<[1], [0], [0], [1], [0, 0, 1, 1], [], []>} : vector<8x36xbf16>, vector<36x32xbf16>, vector<8x32xf32> -> vector<8x32xf32>
    %c0_3 = arith.constant 0 : index
    %c0_4 = arith.constant 0 : index
    %3 = vector.load %arg4[%c0_3, %c0_4] : memref<8x1xf32, #tpu.memory_space<vmem>>, vector<8x1xf32>
    %4 = vector.broadcast %3 : vector<8x1xf32> to vector<8x32xf32>
    %5 = arith.addf %2, %4 : vector<8x32xf32>
    %cst_5 = arith.constant 0.000000e+00 : f32
    %6 = vector.broadcast %cst_5 : f32 to vector<8x32xf32>
    %7 = arith.cmpf oge, %5, %6 : vector<8x32xf32>
    %cst_6 = arith.constant 0.00999999977 : f32
    %8 = vector.broadcast %cst_6 : f32 to vector<8x32xf32>
    %9 = arith.mulf %8, %5 : vector<8x32xf32>
    %10 = arith.select %7, %5, %9 : vector<8x32xi1>, vector<8x32xf32>
    %11 = arith.truncf %10 : vector<8x32xf32> to vector<8x32xbf16>
    %c0_7 = arith.constant 0 : index
    %c0_8 = arith.constant 0 : index
    %12 = vector.load %arg5[%c0_7, %c0_8] : memref<8x32xbf16, #tpu.memory_space<vmem>>, vector<8x32xbf16>
    tpu.vector_store %arg5[%c0_7, %c0_8], %11 {strides = array<i32>} : memref<8x32xbf16, #tpu.memory_space<vmem>>, vector<8x32xbf16>,
    return
  }
  func.func @transform_0(%arg0: i32, %arg1: i32) -> (i32, i32) {
    %c0_i32 = arith.constant 0 : i32
    %c0_i32_0 = arith.constant 0 : i32
    return %arg0, %c0_i32 : i32, i32
  }
  func.func @transform_1(%arg0: i32, %arg1: i32) -> (i32, i32) {
    %c0_i32 = arith.constant 0 : i32
    %c0_i32_0 = arith.constant 0 : i32
    return %c0_i32, %arg1 : i32, i32
  }
  func.func @transform_2(%arg0: i32, %arg1: i32) -> (i32, i32) {
    %c0_i32 = arith.constant 0 : i32
    %c0_i32_0 = arith.constant 0 : i32
    return %arg0, %c0_i32 : i32, i32
  }
  func.func @transform_3(%arg0: i32, %arg1: i32) -> (i32, i32) {
    %c0_i32 = arith.constant 0 : i32
    return %arg0, %arg1 : i32, i32
  }
}

module attributes {stable_mosaic.version = 11 : i64} {
  func.func @_mm_bias_act_single_kernel(%arg0: i32, %arg1: i32, %arg2: memref<2x128xbf16, #tpu.memory_space<vmem>>, %arg3: memref<128x32xbf16, #tpu.memory_space<vmem>>, %arg4: memref<1x32xf32, #tpu.memory_space<vmem>>, %arg5: memref<2x32xbf16, #tpu.memory_space<vmem>>) attributes {dimension_semantics = [#tpu.dimension_semantics<parallel>, #tpu.dimension_semantics<parallel>], iteration_bounds = array<i64: 1, 1>, scalar_prefetch = 0 : i64, scratch_operands = 0 : i64, tpu.core_type = #tpu.core_type<tc>, window_params = [{transform_indices = @transform_0, window_bounds = array<i64: 2, 128>}, {transform_indices = @transform_1, window_bounds = array<i64: 128, 32>}, {transform_indices = @transform_2, window_bounds = array<i64: 1, 32>}, {transform_indices = @transform_3, window_bounds = array<i64: 2, 32>}]} {
    %c0 = arith.constant 0 : index
    %c0_0 = arith.constant 0 : index
    %0 = vector.load %arg2[%c0, %c0_0] : memref<2x128xbf16, #tpu.memory_space<vmem>>, vector<2x128xbf16>
    %c0_1 = arith.constant 0 : index
    %c0_2 = arith.constant 0 : index
    %1 = vector.load %arg3[%c0_1, %c0_2] : memref<128x32xbf16, #tpu.memory_space<vmem>>, vector<128x32xbf16>
    %cst = arith.constant dense<0.000000e+00> : vector<2x32xf32>
    %2 = tpu.matmul %0, %1, %cst {dimension_numbers = #tpu.dot_dimension_numbers<[1], [0], [0], [1], [0, 0, 1, 1], [], []>} : vector<2x128xbf16>, vector<128x32xbf16>, vector<2x32xf32> -> vector<2x32xf32>
    %c0_3 = arith.constant 0 : index
    %c0_4 = arith.constant 0 : index
    %3 = vector.load %arg4[%c0_3, %c0_4] : memref<1x32xf32, #tpu.memory_space<vmem>>, vector<1x32xf32>
    %4 = vector.broadcast %3 : vector<1x32xf32> to vector<2x32xf32>
    %5 = arith.addf %2, %4 : vector<2x32xf32>
    %cst_5 = arith.constant 0.000000e+00 : f32
    %6 = vector.broadcast %cst_5 : f32 to vector<2x32xf32>
    %7 = arith.cmpf oge, %5, %6 : vector<2x32xf32>
    %cst_6 = arith.constant 0.00999999977 : f32
    %8 = vector.broadcast %cst_6 : f32 to vector<2x32xf32>
    %9 = arith.mulf %8, %5 : vector<2x32xf32>
    %10 = arith.select %7, %5, %9 : vector<2x32xi1>, vector<2x32xf32>
    %11 = arith.truncf %10 : vector<2x32xf32> to vector<2x32xbf16>
    %c0_7 = arith.constant 0 : index
    %c0_8 = arith.constant 0 : index
    %12 = vector.load %arg5[%c0_7, %c0_8] : memref<2x32xbf16, #tpu.memory_space<vmem>>, vector<2x32xbf16>
    tpu.vector_store %arg5[%c0_7, %c0_8], %11 {strides = array<i32>} : memref<2x32xbf16, #tpu.memory_space<vmem>>, vector<2x32xbf16>,
    return
  }
  func.func @transform_0(%arg0: i32, %arg1: i32) -> (i32, i32) {
    %c0_i32 = arith.constant 0 : i32
    %c0_i32_0 = arith.constant 0 : i32
    return %arg0, %c0_i32 : i32, i32
  }
  func.func @transform_1(%arg0: i32, %arg1: i32) -> (i32, i32) {
    %c0_i32 = arith.constant 0 : i32
    %c0_i32_0 = arith.constant 0 : i32
    return %c0_i32, %arg1 : i32, i32
  }
  func.func @transform_2(%arg0: i32, %arg1: i32) -> (i32, i32) {
    %c0_i32 = arith.constant 0 : i32
    %c0_i32_0 = arith.constant 0 : i32
    return %c0_i32, %arg1 : i32, i32
  }
  func.func @transform_3(%arg0: i32, %arg1: i32) -> (i32, i32) {
    %c0_i32 = arith.constant 0 : i32
    return %arg0, %arg1 : i32, i32
  }
}

module attributes {stable_mosaic.version = 11 : i64} {
  func.func @_mm_bias_act_single_kernel(%arg0: i32, %arg1: i32, %arg2: memref<2x32xbf16, #tpu.memory_space<vmem>>, %arg3: memref<32x128xbf16, #tpu.memory_space<vmem>>, %arg4: memref<1x128xf32, #tpu.memory_space<vmem>>, %arg5: memref<2x128xbf16, #tpu.memory_space<vmem>>) attributes {dimension_semantics = [#tpu.dimension_semantics<parallel>, #tpu.dimension_semantics<parallel>], iteration_bounds = array<i64: 1, 1>, scalar_prefetch = 0 : i64, scratch_operands = 0 : i64, tpu.core_type = #tpu.core_type<tc>, window_params = [{transform_indices = @transform_0, window_bounds = array<i64: 2, 32>}, {transform_indices = @transform_1, window_bounds = array<i64: 32, 128>}, {transform_indices = @transform_2, window_bounds = array<i64: 1, 128>}, {transform_indices = @transform_3, window_bounds = array<i64: 2, 128>}]} {
    %c0 = arith.constant 0 : index
    %c0_0 = arith.constant 0 : index
    %0 = vector.load %arg2[%c0, %c0_0] : memref<2x32xbf16, #tpu.memory_space<vmem>>, vector<2x32xbf16>
    %c0_1 = arith.constant 0 : index
    %c0_2 = arith.constant 0 : index
    %1 = vector.load %arg3[%c0_1, %c0_2] : memref<32x128xbf16, #tpu.memory_space<vmem>>, vector<32x128xbf16>
    %cst = arith.constant dense<0.000000e+00> : vector<2x128xf32>
    %2 = tpu.matmul %0, %1, %cst {dimension_numbers = #tpu.dot_dimension_numbers<[1], [0], [0], [1], [0, 0, 1, 1], [], []>} : vector<2x32xbf16>, vector<32x128xbf16>, vector<2x128xf32> -> vector<2x128xf32>
    %c0_3 = arith.constant 0 : index
    %c0_4 = arith.constant 0 : index
    %3 = vector.load %arg4[%c0_3, %c0_4] : memref<1x128xf32, #tpu.memory_space<vmem>>, vector<1x128xf32>
    %4 = vector.broadcast %3 : vector<1x128xf32> to vector<2x128xf32>
    %5 = arith.addf %2, %4 : vector<2x128xf32>
    %cst_5 = arith.constant 0.000000e+00 : f32
    %6 = vector.broadcast %cst_5 : f32 to vector<2x128xf32>
    %7 = arith.cmpf oge, %5, %6 : vector<2x128xf32>
    %cst_6 = arith.constant 0.00999999977 : f32
    %8 = vector.broadcast %cst_6 : f32 to vector<2x128xf32>
    %9 = arith.mulf %8, %5 : vector<2x128xf32>
    %10 = arith.select %7, %5, %9 : vector<2x128xi1>, vector<2x128xf32>
    %11 = arith.truncf %10 : vector<2x128xf32> to vector<2x128xbf16>
    %c0_7 = arith.constant 0 : index
    %c0_8 = arith.constant 0 : index
    %12 = vector.load %arg5[%c0_7, %c0_8] : memref<2x128xbf16, #tpu.memory_space<vmem>>, vector<2x128xbf16>
    tpu.vector_store %arg5[%c0_7, %c0_8], %11 {strides = array<i32>} : memref<2x128xbf16, #tpu.memory_space<vmem>>, vector<2x128xbf16>,
    return
  }
  func.func @transform_0(%arg0: i32, %arg1: i32) -> (i32, i32) {
    %c0_i32 = arith.constant 0 : i32
    %c0_i32_0 = arith.constant 0 : i32
    return %arg0, %c0_i32 : i32, i32
  }
  func.func @transform_1(%arg0: i32, %arg1: i32) -> (i32, i32) {
    %c0_i32 = arith.constant 0 : i32
    %c0_i32_0 = arith.constant 0 : i32
    return %c0_i32, %arg1 : i32, i32
  }
  func.func @transform_2(%arg0: i32, %arg1: i32) -> (i32, i32) {
    %c0_i32 = arith.constant 0 : i32
    %c0_i32_0 = arith.constant 0 : i32
    return %c0_i32, %arg1 : i32, i32
  }
  func.func @transform_3(%arg0: i32, %arg1: i32) -> (i32, i32) {
    %c0_i32 = arith.constant 0 : i32
    return %arg0, %arg1 : i32, i32
  }
}

module attributes {stable_mosaic.version = 11 : i64} {
  func.func @_mm_bias_act_single_kernel(%arg0: i32, %arg1: i32, %arg2: memref<16x32xbf16, #tpu.memory_space<vmem>>, %arg3: memref<32x32xbf16, #tpu.memory_space<vmem>>, %arg4: memref<16x1xf32, #tpu.memory_space<vmem>>, %arg5: memref<16x32xbf16, #tpu.memory_space<vmem>>) attributes {dimension_semantics = [#tpu.dimension_semantics<parallel>, #tpu.dimension_semantics<parallel>], iteration_bounds = array<i64: 1, 1>, scalar_prefetch = 0 : i64, scratch_operands = 0 : i64, tpu.core_type = #tpu.core_type<tc>, window_params = [{transform_indices = @transform_0, window_bounds = array<i64: 16, 32>}, {transform_indices = @transform_1, window_bounds = array<i64: 32, 32>}, {transform_indices = @transform_2, window_bounds = array<i64: 16, 1>}, {transform_indices = @transform_3, window_bounds = array<i64: 16, 32>}]} {
    %c0 = arith.constant 0 : index
    %c0_0 = arith.constant 0 : index
    %0 = vector.load %arg2[%c0, %c0_0] : memref<16x32xbf16, #tpu.memory_space<vmem>>, vector<16x32xbf16>
    %c0_1 = arith.constant 0 : index
    %c0_2 = arith.constant 0 : index
    %1 = vector.load %arg3[%c0_1, %c0_2] : memref<32x32xbf16, #tpu.memory_space<vmem>>, vector<32x32xbf16>
    %cst = arith.constant dense<0.000000e+00> : vector<16x32xf32>
    %2 = tpu.matmul %0, %1, %cst {dimension_numbers = #tpu.dot_dimension_numbers<[1], [0], [0], [1], [0, 0, 1, 1], [], []>} : vector<16x32xbf16>, vector<32x32xbf16>, vector<16x32xf32> -> vector<16x32xf32>
    %c0_3 = arith.constant 0 : index
    %c0_4 = arith.constant 0 : index
    %3 = vector.load %arg4[%c0_3, %c0_4] : memref<16x1xf32, #tpu.memory_space<vmem>>, vector<16x1xf32>
    %4 = vector.broadcast %3 : vector<16x1xf32> to vector<16x32xf32>
    %5 = arith.addf %2, %4 : vector<16x32xf32>
    %cst_5 = arith.constant 0.000000e+00 : f32
    %6 = vector.broadcast %cst_5 : f32 to vector<16x32xf32>
    %7 = arith.cmpf oge, %5, %6 : vector<16x32xf32>
    %cst_6 = arith.constant 0.00999999977 : f32
    %8 = vector.broadcast %cst_6 : f32 to vector<16x32xf32>
    %9 = arith.mulf %8, %5 : vector<16x32xf32>
    %10 = arith.select %7, %5, %9 : vector<16x32xi1>, vector<16x32xf32>
    %11 = arith.truncf %10 : vector<16x32xf32> to vector<16x32xbf16>
    %c0_7 = arith.constant 0 : index
    %c0_8 = arith.constant 0 : index
    %12 = vector.load %arg5[%c0_7, %c0_8] : memref<16x32xbf16, #tpu.memory_space<vmem>>, vector<16x32xbf16>
    tpu.vector_store %arg5[%c0_7, %c0_8], %11 {strides = array<i32>} : memref<16x32xbf16, #tpu.memory_space<vmem>>, vector<16x32xbf16>,
    return
  }
  func.func @transform_0(%arg0: i32, %arg1: i32) -> (i32, i32) {
    %c0_i32 = arith.constant 0 : i32
    %c0_i32_0 = arith.constant 0 : i32
    return %arg0, %c0_i32 : i32, i32
  }
  func.func @transform_1(%arg0: i32, %arg1: i32) -> (i32, i32) {
    %c0_i32 = arith.constant 0 : i32
    %c0_i32_0 = arith.constant 0 : i32
    return %c0_i32, %arg1 : i32, i32
  }
  func.func @transform_2(%arg0: i32, %arg1: i32) -> (i32, i32) {
    %c0_i32 = arith.constant 0 : i32
    %c0_i32_0 = arith.constant 0 : i32
    return %arg0, %c0_i32 : i32, i32
  }
  func.func @transform_3(%arg0: i32, %arg1: i32) -> (i32, i32) {
    %c0_i32 = arith.constant 0 : i32
    return %arg0, %arg1 : i32, i32
  }
}

module attributes {stable_mosaic.version = 11 : i64} {
  func.func @_mm_bias_act_single_kernel(%arg0: i32, %arg1: i32, %arg2: memref<8x16xbf16, #tpu.memory_space<vmem>>, %arg3: memref<16x128xbf16, #tpu.memory_space<vmem>>, %arg4: memref<8x1xf32, #tpu.memory_space<vmem>>, %arg5: memref<8x128xf32, #tpu.memory_space<vmem>>) attributes {dimension_semantics = [#tpu.dimension_semantics<parallel>, #tpu.dimension_semantics<parallel>], iteration_bounds = array<i64: 1, 1>, scalar_prefetch = 0 : i64, scratch_operands = 0 : i64, tpu.core_type = #tpu.core_type<tc>, window_params = [{transform_indices = @transform_0, window_bounds = array<i64: 8, 16>}, {transform_indices = @transform_1, window_bounds = array<i64: 16, 128>}, {transform_indices = @transform_2, window_bounds = array<i64: 8, 1>}, {transform_indices = @transform_3, window_bounds = array<i64: 8, 128>}]} {
    %c0 = arith.constant 0 : index
    %c0_0 = arith.constant 0 : index
    %0 = vector.load %arg2[%c0, %c0_0] : memref<8x16xbf16, #tpu.memory_space<vmem>>, vector<8x16xbf16>
    %c0_1 = arith.constant 0 : index
    %c0_2 = arith.constant 0 : index
    %1 = vector.load %arg3[%c0_1, %c0_2] : memref<16x128xbf16, #tpu.memory_space<vmem>>, vector<16x128xbf16>
    %cst = arith.constant dense<0.000000e+00> : vector<8x128xf32>
    %2 = tpu.matmul %0, %1, %cst {dimension_numbers = #tpu.dot_dimension_numbers<[1], [0], [0], [1], [0, 0, 1, 1], [], []>} : vector<8x16xbf16>, vector<16x128xbf16>, vector<8x128xf32> -> vector<8x128xf32>
    %c0_3 = arith.constant 0 : index
    %c0_4 = arith.constant 0 : index
    %3 = vector.load %arg4[%c0_3, %c0_4] : memref<8x1xf32, #tpu.memory_space<vmem>>, vector<8x1xf32>
    %4 = vector.broadcast %3 : vector<8x1xf32> to vector<8x128xf32>
    %5 = arith.addf %2, %4 : vector<8x128xf32>
    %c0_5 = arith.constant 0 : index
    %c0_6 = arith.constant 0 : index
    %6 = vector.load %arg5[%c0_5, %c0_6] : memref<8x128xf32, #tpu.memory_space<vmem>>, vector<8x128xf32>
    tpu.vector_store %arg5[%c0_5, %c0_6], %5 {strides = array<i32>} : memref<8x128xf32, #tpu.memory_space<vmem>>, vector<8x128xf32>,
    return
  }
  func.func @transform_0(%arg0: i32, %arg1: i32) -> (i32, i32) {
    %c0_i32 = arith.constant 0 : i32
    %c0_i32_0 = arith.constant 0 : i32
    return %arg0, %c0_i32 : i32, i32
  }
  func.func @transform_1(%arg0: i32, %arg1: i32) -> (i32, i32) {
    %c0_i32 = arith.constant 0 : i32
    %c0_i32_0 = arith.constant 0 : i32
    return %c0_i32, %arg1 : i32, i32
  }
  func.func @transform_2(%arg0: i32, %arg1: i32) -> (i32, i32) {
    %c0_i32 = arith.constant 0 : i32
    %c0_i32_0 = arith.constant 0 : i32
    return %arg0, %c0_i32 : i32, i32
  }
  func.func @transform_3(%arg0: i32, %arg1: i32) -> (i32, i32) {
    %c0_i32 = arith.constant 0 : i32
    return %arg0, %arg1 : i32, i32
  }
}

</mosaic_0001>

<llo_original>
// kernel: conv_autoencoder_forward.6
$region0: #{conv_autoencoder_forward.6}
  #allocation0 [shape = 'u32[]', space=smem, size = 0x4, offset = 0x4, fixed_abs, tag = 'smem constant byte address 0x4 - core index']
  #allocation1 [shape = 'u32[72,128]{1,0:T(1,128)}', space=vmem, size = 0x9000, scoped, tag = 'internal scratch']
  %s0 = inlined_call_operand.vmem [shape: bf16[4,18], index: 0, kind: input, shape index: {}]
  %s1 = inlined_call_operand.vmem [shape: bf16[18,128], index: 1, kind: input, shape index: {}]
  %s2 = inlined_call_operand.vmem [shape: f32[4,1], index: 2, kind: input, shape index: {}]
  %s3 = inlined_call_operand.vmem [shape: bf16[4,128], index: 3, kind: output, shape index: {}]
  %s4 = sld [smem:[#allocation0]]
  $region22: #{conv_autoencoder_forward.6} parent=0
    _
  %s6 = ssub.s32 1, %s4
  %s7 = scalar_select 0, %s6, %s4
  // Predicated region
  $region2: #{conv_autoencoder_forward.6} parent=0 // pred_check
    _
  $region3: #{conv_autoencoder_forward.6} parent=0 // pred_check_branch
    %9 = sbr.rel (0) target = $region5
  $region4: #{conv_autoencoder_forward.6} parent=0 // pred_region
    _
  $region5: #{conv_autoencoder_forward.6} parent=0 // pred_fallthru
    _
  // Predicated region
  $region6: #{conv_autoencoder_forward.6} parent=0 // pred_check
    _
  $region7: #{conv_autoencoder_forward.6} parent=0 // pred_check_branch
    %11 = sbr.rel (0) target = $region9
  $region8: #{conv_autoencoder_forward.6} parent=0 // pred_region
    _
  $region9: #{conv_autoencoder_forward.6} parent=0 // pred_fallthru
    _
  // Predicated region
  $region10: #{conv_autoencoder_forward.6} parent=0 // pred_check
    _
  $region11: #{conv_autoencoder_forward.6} parent=0 // pred_check_branch
    %13 = sbr.rel (0) target = $region13
  $region12: #{conv_autoencoder_forward.6} parent=0 // pred_region
    _
  $region13: #{conv_autoencoder_forward.6} parent=0 // pred_fallthru
    _
  %v15 = vld [vmem:[%s0] sm:$0x3]
  %v16 = vld [vmem:[%s1] sm:$0xf]
  %v17 = vld [vmem:[%s1 + $0x4] sm:$0xf]
  %v18 = vld [vmem:[%s1 + $0x8] sm:$0x1]
  %v19 = vld [vmem:[%s2] sm:$0xf]
  %21 = vset.pattern.permute.xlu0 0
  %22 = vperm.xlu0 %21, %v19
  %v23 = vpop.permute.xlu0 %22
  %v28 = vunpack.c.l.b16 %v16
  %v29 = vunpack.c.l.b16 %v17
  %v30 = vunpack.c.l.b16 %v18
  %v31 = vpack.c.b16 %v29, %v28
  %v32 = vpack.c.b16 %v30, %v30
  %vm34 = vcmask 146432
  %v36 = vsel %vm34, %v15, 0
  %vm38 = vcmask 1040384
  %v40 = vsel %vm38, %v32, 0
  %42 = vmatpush.bf16.msra.mxu0 0
  %43 = vmatpush.bf16.msra.mxu0 0
  %44 = vmatpush.bf16.msra.mxu0 0
  %45 = vmatpush.bf16.msra.mxu0 0
  %46 = vmatpush.bf16.msra.mxu0 0
  %47 = vmatpush.bf16.msra.mxu0 0
  %48 = vmatpush.bf16.msra.mxu0 %v40
  %49 = vmatpush.bf16.msra.mxu0 %v31
  %50 = vmatmul.bf16.gmra.mxu0 %v36
  %v51 = vpop.f32.mrf.mxu0
  %v52 = vadd.f32 %v23, %v51
  %v53 = vpop.f32.mrf.mxu0
  %54 = vdwg.mxu0
  %vm55 = vcmp.ge.f32.partialorder %v52, 0.0
  %v56 = vmul.f32 %v52, 0.01
  %v57 = vsel %vm55, %v52, %v56
  %v58 = vpack.c.bf16 %v57, %v57
  %59 = vst [vmem:[%s3] sm:$0x3] %v58
  // Predicated region
  $region14: #{conv_autoencoder_forward.6} parent=0 // pred_check
    _
  $region15: #{conv_autoencoder_forward.6} parent=0 // pred_check_branch
    %61 = sbr.rel (0) target = $region17
  $region16: #{conv_autoencoder_forward.6} parent=0 // pred_region
    _
  $region17: #{conv_autoencoder_forward.6} parent=0 // pred_fallthru
    _
  // Predicated region
  $region18: #{conv_autoencoder_forward.6} parent=0 // pred_check
    _
  $region19: #{conv_autoencoder_forward.6} parent=0 // pred_check_branch
    %63 = sbr.rel (0) target = $region21
  $region20: #{conv_autoencoder_forward.6} parent=0 // pred_region
    _
  $region21: #{conv_autoencoder_forward.6} parent=0 // pred_fallthru
    _

// kernel: conv_autoencoder_forward.7
$region0: #{conv_autoencoder_forward.7}
  #allocation0 [shape = 'u32[]', space=smem, size = 0x4, offset = 0x4, fixed_abs, tag = 'smem constant byte address 0x4 - core index']
  #allocation1 [shape = 'u32[72,128]{1,0:T(1,128)}', space=vmem, size = 0x9000, scoped, tag = 'internal scratch']
  %s0 = inlined_call_operand.vmem [shape: bf16[8,36], index: 0, kind: input, shape index: {}]
  %s1 = inlined_call_operand.vmem [shape: bf16[36,32], index: 1, kind: input, shape index: {}]
  %s2 = inlined_call_operand.vmem [shape: f32[8,1], index: 2, kind: input, shape index: {}]
  %s3 = inlined_call_operand.vmem [shape: bf16[8,32], index: 3, kind: output, shape index: {}]
  %s4 = sld [smem:[#allocation0]]
  $region22: #{conv_autoencoder_forward.7} parent=0
    _
  %s6 = ssub.s32 1, %s4
  %s7 = scalar_select 0, %s6, %s4
  // Predicated region
  $region2: #{conv_autoencoder_forward.7} parent=0 // pred_check
    _
  $region3: #{conv_autoencoder_forward.7} parent=0 // pred_check_branch
    %9 = sbr.rel (0) target = $region5
  $region4: #{conv_autoencoder_forward.7} parent=0 // pred_region
    _
  $region5: #{conv_autoencoder_forward.7} parent=0 // pred_fallthru
    _
  // Predicated region
  $region6: #{conv_autoencoder_forward.7} parent=0 // pred_check
    _
  $region7: #{conv_autoencoder_forward.7} parent=0 // pred_check_branch
    %11 = sbr.rel (0) target = $region9
  $region8: #{conv_autoencoder_forward.7} parent=0 // pred_region
    _
  $region9: #{conv_autoencoder_forward.7} parent=0 // pred_fallthru
    _
  // Predicated region
  $region10: #{conv_autoencoder_forward.7} parent=0 // pred_check
    _
  $region11: #{conv_autoencoder_forward.7} parent=0 // pred_check_branch
    %13 = sbr.rel (0) target = $region13
  $region12: #{conv_autoencoder_forward.7} parent=0 // pred_region
    _
  $region13: #{conv_autoencoder_forward.7} parent=0 // pred_fallthru
    _
  %v15 = vld [vmem:[%s0] sm:$0xf]
  %v16 = vld [vmem:[%s1] sm:$0xf]
  %v17 = vld [vmem:[%s1 + $0x4] sm:$0xf]
  %v18 = vld [vmem:[%s1 + $0x8] sm:$0xf]
  %v19 = vld [vmem:[%s1 + $0xc] sm:$0xf]
  %v20 = vld [vmem:[%s1 + $0x10] sm:$0x3]
  %v21 = vld [vmem:[%s2] sm:$0xff]
  %23 = vset.pattern.permute.xlu0 0
  %24 = vperm.xlu0 %23, %v21
  %v25 = vpop.permute.xlu0 %24
  %v32 = vunpack.c.l.b16 %v16
  %v33 = vunpack.c.l.b16 %v17
  %v34 = vunpack.c.l.b16 %v18
  %v35 = vunpack.c.l.b16 %v19
  %v36 = vunpack.c.l.b16 %v20
  %v37 = vpack.c.b16 %v33, %v32
  %v38 = vpack.c.b16 %v35, %v34
  %v39 = vpack.c.b16 %v36, %v36
  %vm42 = vcmask 293888
  %v44 = vsel %vm42, %v15, 0
  %vm46 = vcmask 1041408
  %v48 = vsel %vm46, %v39, 0
  %50 = vmatpush.bf16.msra.mxu0 0
  %51 = vmatpush.bf16.msra.mxu0 0
  %52 = vmatpush.bf16.msra.mxu0 0
  %53 = vmatpush.bf16.msra.mxu0 0
  %54 = vmatpush.bf16.msra.mxu0 0
  %55 = vmatpush.bf16.msra.mxu0 %v48
  %56 = vmatpush.bf16.msra.mxu0 %v38
  %57 = vmatpush.bf16.msra.mxu0 %v37
  %58 = vmatmul.bf16.gmra.mxu0 %v44
  %v59 = vpop.f32.mrf.mxu0
  %v60 = vadd.f32 %v25, %v59
  %v61 = vpop.f32.mrf.mxu0
  %62 = vdwg.mxu0
  %vm63 = vcmp.ge.f32.partialorder %v60, 0.0
  %v64 = vmul.f32 %v60, 0.01
  %v65 = vsel %vm63, %v60, %v64
  %v66 = vpack.c.bf16 %v65, %v65
  %vm67 = vcmask 257024
  %68 = vst.msk [vmem:[%s3] sm:$0xf] %vm67, %v66
  // Predicated region
  $region14: #{conv_autoencoder_forward.7} parent=0 // pred_check
    _
  $region15: #{conv_autoencoder_forward.7} parent=0 // pred_check_branch
    %70 = sbr.rel (0) target = $region17
  $region16: #{conv_autoencoder_forward.7} parent=0 // pred_region
    _
  $region17: #{conv_autoencoder_forward.7} parent=0 // pred_fallthru
    _
  // Predicated region
  $region18: #{conv_autoencoder_forward.7} parent=0 // pred_check
    _
  $region19: #{conv_autoencoder_forward.7} parent=0 // pred_check_branch
    %72 = sbr.rel (0) target = $region21
  $region20: #{conv_autoencoder_forward.7} parent=0 // pred_region
    _
  $region21: #{conv_autoencoder_forward.7} parent=0 // pred_fallthru
    _

// kernel: conv_autoencoder_forward.8
$region0: #{conv_autoencoder_forward.8}
  #allocation0 [shape = 'u32[]', space=smem, size = 0x4, offset = 0x4, fixed_abs, tag = 'smem constant byte address 0x4 - core index']
  #allocation1 [shape = 'u32[72,128]{1,0:T(1,128)}', space=vmem, size = 0x9000, scoped, tag = 'internal scratch']
  %s0 = inlined_call_operand.vmem [shape: bf16[2,128], index: 0, kind: input, shape index: {}]
  %s1 = inlined_call_operand.vmem [shape: bf16[128,32], index: 1, kind: input, shape index: {}]
  %s2 = inlined_call_operand.vmem [shape: f32[1,32], index: 2, kind: input, shape index: {}]
  %s3 = inlined_call_operand.vmem [shape: bf16[2,32], index: 3, kind: output, shape index: {}]
  %s4 = sld [smem:[#allocation0]]
  $region22: #{conv_autoencoder_forward.8} parent=0
    _
  %s6 = ssub.s32 1, %s4
  %s7 = scalar_select 0, %s6, %s4
  // Predicated region
  $region2: #{conv_autoencoder_forward.8} parent=0 // pred_check
    _
  $region3: #{conv_autoencoder_forward.8} parent=0 // pred_check_branch
    %9 = sbr.rel (0) target = $region5
  $region4: #{conv_autoencoder_forward.8} parent=0 // pred_region
    _
  $region5: #{conv_autoencoder_forward.8} parent=0 // pred_fallthru
    _
  // Predicated region
  $region6: #{conv_autoencoder_forward.8} parent=0 // pred_check
    _
  $region7: #{conv_autoencoder_forward.8} parent=0 // pred_check_branch
    %11 = sbr.rel (0) target = $region9
  $region8: #{conv_autoencoder_forward.8} parent=0 // pred_region
    _
  $region9: #{conv_autoencoder_forward.8} parent=0 // pred_fallthru
    _
  // Predicated region
  $region10: #{conv_autoencoder_forward.8} parent=0 // pred_check
    _
  $region11: #{conv_autoencoder_forward.8} parent=0 // pred_check_branch
    %13 = sbr.rel (0) target = $region13
  $region12: #{conv_autoencoder_forward.8} parent=0 // pred_region
    _
  $region13: #{conv_autoencoder_forward.8} parent=0 // pred_fallthru
    _
  %v14 = vld [vmem:[%s0] sm:$0x1]
  %v15 = vld [vmem:[%s1] sm:$0xf]
  %v16 = vld [vmem:[%s1 + $0x4] sm:$0xf]
  %v17 = vld [vmem:[%s1 + $0x8] sm:$0xf]
  %v18 = vld [vmem:[%s1 + $0xc] sm:$0xf]
  %v19 = vld [vmem:[%s1 + $0x10] sm:$0xf]
  %v20 = vld [vmem:[%s1 + $0x14] sm:$0xf]
  %v21 = vld [vmem:[%s1 + $0x18] sm:$0xf]
  %v22 = vld [vmem:[%s1 + $0x1c] sm:$0xf]
  %v23 = vld [vmem:[%s1 + $0x20] sm:$0xf]
  %v24 = vld [vmem:[%s1 + $0x24] sm:$0xf]
  %v25 = vld [vmem:[%s1 + $0x28] sm:$0xf]
  %v26 = vld [vmem:[%s1 + $0x2c] sm:$0xf]
  %v27 = vld [vmem:[%s1 + $0x30] sm:$0xf]
  %v28 = vld [vmem:[%s1 + $0x34] sm:$0xf]
  %v29 = vld [vmem:[%s1 + $0x38] sm:$0xf]
  %v30 = vld [vmem:[%s1 + $0x3c] sm:$0xf]
  %v31 = vld [vmem:[%s2] sm:$0x1]
  %v33 = vperm.slane %v31, 0
  %v51 = vunpack.c.l.b16 %v15
  %v52 = vunpack.c.l.b16 %v16
  %v53 = vunpack.c.l.b16 %v17
  %v54 = vunpack.c.l.b16 %v18
  %v55 = vunpack.c.l.b16 %v19
  %v56 = vunpack.c.l.b16 %v20
  %v57 = vunpack.c.l.b16 %v21
  %v58 = vunpack.c.l.b16 %v22
  %v59 = vunpack.c.l.b16 %v23
  %v60 = vunpack.c.l.b16 %v24
  %v61 = vunpack.c.l.b16 %v25
  %v62 = vunpack.c.l.b16 %v26
  %v63 = vunpack.c.l.b16 %v27
  %v64 = vunpack.c.l.b16 %v28
  %v65 = vunpack.c.l.b16 %v29
  %v66 = vunpack.c.l.b16 %v30
  %v67 = vpack.c.b16 %v52, %v51
  %v68 = vpack.c.b16 %v54, %v53
  %v69 = vpack.c.b16 %v56, %v55
  %v70 = vpack.c.b16 %v58, %v57
  %v71 = vpack.c.b16 %v60, %v59
  %v72 = vpack.c.b16 %v62, %v61
  %v73 = vpack.c.b16 %v64, %v63
  %v74 = vpack.c.b16 %v66, %v65
  %83 = vmatpush.bf16.msra.mxu0 %v74
  %84 = vmatpush.bf16.msra.mxu0 %v73
  %85 = vmatpush.bf16.msra.mxu0 %v72
  %86 = vmatpush.bf16.msra.mxu0 %v71
  %87 = vmatpush.bf16.msra.mxu0 %v70
  %88 = vmatpush.bf16.msra.mxu0 %v69
  %89 = vmatpush.bf16.msra.mxu0 %v68
  %90 = vmatpush.bf16.msra.mxu0 %v67
  %91 = vmatmul.bf16.gmra.mxu0 %v14
  %v92 = vpop.f32.mrf.mxu0
  %v93 = vadd.f32 %v33, %v92
  %v94 = vpop.f32.mrf.mxu0
  %95 = vdwg.mxu0
  %vm96 = vcmp.ge.f32.partialorder %v93, 0.0
  %v97 = vmul.f32 %v93, 0.01
  %v98 = vsel %vm96, %v93, %v97
  %v99 = vpack.c.bf16 %v98, %v98
  %vm100 = vcmask 253952
  %101 = vst.msk [vmem:[%s3] sm:$0x1] %vm100, %v99
  // Predicated region
  $region14: #{conv_autoencoder_forward.8} parent=0 // pred_check
    _
  $region15: #{conv_autoencoder_forward.8} parent=0 // pred_check_branch
    %103 = sbr.rel (0) target = $region17
  $region16: #{conv_autoencoder_forward.8} parent=0 // pred_region
    _
  $region17: #{conv_autoencoder_forward.8} parent=0 // pred_fallthru
    _
  // Predicated region
  $region18: #{conv_autoencoder_forward.8} parent=0 // pred_check
    _
  $region19: #{conv_autoencoder_forward.8} parent=0 // pred_check_branch
    %105 = sbr.rel (0) target = $region21
  $region20: #{conv_autoencoder_forward.8} parent=0 // pred_region
    _
  $region21: #{conv_autoencoder_forward.8} parent=0 // pred_fallthru
    _

// kernel: conv_autoencoder_forward.9
$region0: #{conv_autoencoder_forward.9}
  #allocation0 [shape = 'u32[]', space=smem, size = 0x4, offset = 0x4, fixed_abs, tag = 'smem constant byte address 0x4 - core index']
  #allocation1 [shape = 'u32[72,128]{1,0:T(1,128)}', space=vmem, size = 0x9000, scoped, tag = 'internal scratch']
  %s0 = inlined_call_operand.vmem [shape: bf16[2,32], index: 0, kind: input, shape index: {}]
  %s1 = inlined_call_operand.vmem [shape: bf16[32,128], index: 1, kind: input, shape index: {}]
  %s2 = inlined_call_operand.vmem [shape: f32[1,128], index: 2, kind: input, shape index: {}]
  %s3 = inlined_call_operand.vmem [shape: bf16[2,128], index: 3, kind: output, shape index: {}]
  %s4 = sld [smem:[#allocation0]]
  $region22: #{conv_autoencoder_forward.9} parent=0
    _
  %s6 = ssub.s32 1, %s4
  %s7 = scalar_select 0, %s6, %s4
  // Predicated region
  $region2: #{conv_autoencoder_forward.9} parent=0 // pred_check
    _
  $region3: #{conv_autoencoder_forward.9} parent=0 // pred_check_branch
    %9 = sbr.rel (0) target = $region5
  $region4: #{conv_autoencoder_forward.9} parent=0 // pred_region
    _
  $region5: #{conv_autoencoder_forward.9} parent=0 // pred_fallthru
    _
  // Predicated region
  $region6: #{conv_autoencoder_forward.9} parent=0 // pred_check
    _
  $region7: #{conv_autoencoder_forward.9} parent=0 // pred_check_branch
    %11 = sbr.rel (0) target = $region9
  $region8: #{conv_autoencoder_forward.9} parent=0 // pred_region
    _
  $region9: #{conv_autoencoder_forward.9} parent=0 // pred_fallthru
    _
  // Predicated region
  $region10: #{conv_autoencoder_forward.9} parent=0 // pred_check
    _
  $region11: #{conv_autoencoder_forward.9} parent=0 // pred_check_branch
    %13 = sbr.rel (0) target = $region13
  $region12: #{conv_autoencoder_forward.9} parent=0 // pred_region
    _
  $region13: #{conv_autoencoder_forward.9} parent=0 // pred_fallthru
    _
  %v15 = vld [vmem:[%s0] sm:$0x1]
  %v16 = vld [vmem:[%s1] sm:$0xf]
  %v17 = vld [vmem:[%s1 + $0x4] sm:$0xf]
  %v18 = vld [vmem:[%s1 + $0x8] sm:$0xf]
  %v19 = vld [vmem:[%s1 + $0xc] sm:$0xf]
  %v20 = vld [vmem:[%s2] sm:$0x1]
  %v22 = vperm.slane %v20, 0
  %v28 = vunpack.c.l.b16 %v16
  %v29 = vunpack.c.l.b16 %v17
  %v30 = vunpack.c.l.b16 %v18
  %v31 = vunpack.c.l.b16 %v19
  %v32 = vpack.c.b16 %v29, %v28
  %v33 = vpack.c.b16 %v31, %v30
  %vm36 = vcmask 261120
  %v38 = vsel %vm36, %v15, 0
  %40 = vmatpush.bf16.msra.mxu0 0
  %41 = vmatpush.bf16.msra.mxu0 0
  %42 = vmatpush.bf16.msra.mxu0 0
  %43 = vmatpush.bf16.msra.mxu0 0
  %44 = vmatpush.bf16.msra.mxu0 0
  %45 = vmatpush.bf16.msra.mxu0 0
  %46 = vmatpush.bf16.msra.mxu0 %v33
  %47 = vmatpush.bf16.msra.mxu0 %v32
  %48 = vmatmul.bf16.gmra.mxu0 %v38
  %v49 = vpop.f32.mrf.mxu0
  %v50 = vadd.f32 %v22, %v49
  %v51 = vpop.f32.mrf.mxu0
  %52 = vdwg.mxu0
  %vm53 = vcmp.ge.f32.partialorder %v50, 0.0
  %v54 = vmul.f32 %v50, 0.01
  %v55 = vsel %vm53, %v50, %v54
  %v56 = vpack.c.bf16 %v55, %v55
  %57 = vst [vmem:[%s3] sm:$0x1] %v56
  // Predicated region
  $region14: #{conv_autoencoder_forward.9} parent=0 // pred_check
    _
  $region15: #{conv_autoencoder_forward.9} parent=0 // pred_check_branch
    %59 = sbr.rel (0) target = $region17
  $region16: #{conv_autoencoder_forward.9} parent=0 // pred_region
    _
  $region17: #{conv_autoencoder_forward.9} parent=0 // pred_fallthru
    _
  // Predicated region
  $region18: #{conv_autoencoder_forward.9} parent=0 // pred_check
    _
  $region19: #{conv_autoencoder_forward.9} parent=0 // pred_check_branch
    %61 = sbr.rel (0) target = $region21
  $region20: #{conv_autoencoder_forward.9} parent=0 // pred_region
    _
  $region21: #{conv_autoencoder_forward.9} parent=0 // pred_fallthru
    _

// kernel: conv_autoencoder_forward.10
$region0: #{conv_autoencoder_forward.10}
  #allocation0 [shape = 'u32[]', space=smem, size = 0x4, offset = 0x4, fixed_abs, tag = 'smem constant byte address 0x4 - core index']
  #allocation1 [shape = 'u32[72,128]{1,0:T(1,128)}', space=vmem, size = 0x9000, scoped, tag = 'internal scratch']
  %s0 = inlined_call_operand.vmem [shape: bf16[16,32], index: 0, kind: input, shape index: {}]
  %s1 = inlined_call_operand.vmem [shape: bf16[32,32], index: 1, kind: input, shape index: {}]
  %s2 = inlined_call_operand.vmem [shape: f32[16,1], index: 2, kind: input, shape index: {}]
  %s3 = inlined_call_operand.vmem [shape: bf16[16,32], index: 3, kind: output, shape index: {}]
  %s4 = sld [smem:[#allocation0]]
  $region22: #{conv_autoencoder_forward.10} parent=0
    _
  %s6 = ssub.s32 1, %s4
  %s7 = scalar_select 0, %s6, %s4
  // Predicated region
  $region2: #{conv_autoencoder_forward.10} parent=0 // pred_check
    _
  $region3: #{conv_autoencoder_forward.10} parent=0 // pred_check_branch
    %9 = sbr.rel (0) target = $region5
  $region4: #{conv_autoencoder_forward.10} parent=0 // pred_region
    _
  $region5: #{conv_autoencoder_forward.10} parent=0 // pred_fallthru
    _
  // Predicated region
  $region6: #{conv_autoencoder_forward.10} parent=0 // pred_check
    _
  $region7: #{conv_autoencoder_forward.10} parent=0 // pred_check_branch
    %11 = sbr.rel (0) target = $region9
  $region8: #{conv_autoencoder_forward.10} parent=0 // pred_region
    _
  $region9: #{conv_autoencoder_forward.10} parent=0 // pred_fallthru
    _
  // Predicated region
  $region10: #{conv_autoencoder_forward.10} parent=0 // pred_check
    _
  $region11: #{conv_autoencoder_forward.10} parent=0 // pred_check_branch
    %13 = sbr.rel (0) target = $region13
  $region12: #{conv_autoencoder_forward.10} parent=0 // pred_region
    _
  $region13: #{conv_autoencoder_forward.10} parent=0 // pred_fallthru
    _
  %v15 = vld [vmem:[%s0] sm:$0xf]
  %v16 = vld [vmem:[%s0 + $0x4] sm:$0xf]
  %v17 = vld [vmem:[%s1] sm:$0xf]
  %v18 = vld [vmem:[%s1 + $0x4] sm:$0xf]
  %v19 = vld [vmem:[%s1 + $0x8] sm:$0xf]
  %v20 = vld [vmem:[%s1 + $0xc] sm:$0xf]
  %v21 = vld [vmem:[%s2] sm:$0xff]
  %v22 = vld [vmem:[%s2 + $0x8] sm:$0xff]
  %24 = vset.pattern.permute.xlu0 0
  %25 = vperm.xlu0 %24, %v21
  %v26 = vpop.permute.xlu0 %25
  %29 = vset.pattern.permute.xlu0 0
  %30 = vperm.xlu0 %29, %v22
  %v31 = vpop.permute.xlu0 %30
  %v35 = vunpack.c.l.b16 %v15
  %v36 = vunpack.c.l.b16 %v16
  %v37 = vpack.c.b16 %v36, %v35
  %v42 = vunpack.c.l.b16 %v17
  %v43 = vunpack.c.l.b16 %v18
  %v44 = vunpack.c.l.b16 %v19
  %v45 = vunpack.c.l.b16 %v20
  %v46 = vpack.c.b16 %v43, %v42
  %v47 = vpack.c.b16 %v45, %v44
  %vm50 = vcmask 261120
  %v52 = vsel %vm50, %v37, 0
  %54 = vmatpush.bf16.msra.mxu0 0
  %55 = vmatpush.bf16.msra.mxu0 0
  %56 = vmatpush.bf16.msra.mxu0 0
  %57 = vmatpush.bf16.msra.mxu0 0
  %58 = vmatpush.bf16.msra.mxu0 0
  %59 = vmatpush.bf16.msra.mxu0 0
  %60 = vmatpush.bf16.msra.mxu0 %v47
  %61 = vmatpush.bf16.msra.mxu0 %v46
  %62 = vmatmul.bf16.gmra.mxu0 %v52
  %v63 = vpop.f32.mrf.mxu0
  %v64 = vadd.f32 %v26, %v63
  %v65 = vpop.f32.mrf.mxu0
  %v66 = vadd.f32 %v31, %v65
  %67 = vdwg.mxu0
  %vm68 = vcmp.ge.f32.partialorder %v64, 0.0
  %vm69 = vcmp.ge.f32.partialorder %v66, 0.0
  %v70 = vmul.f32 %v64, 0.01
  %v71 = vmul.f32 %v66, 0.01
  %v72 = vsel %vm68, %v64, %v70
  %v73 = vsel %vm69, %v66, %v71
  %v74 = vpack.c.bf16 %v72, %v72
  %v75 = vpack.c.bf16 %v73, %v73
  %vm76 = vcmask 257024
  %77 = vst.msk [vmem:[%s3] sm:$0xf] %vm76, %v74
  %78 = vst.msk [vmem:[%s3 + $0x4] sm:$0xf] %vm76, %v75
  // Predicated region
  $region14: #{conv_autoencoder_forward.10} parent=0 // pred_check
    _
  $region15: #{conv_autoencoder_forward.10} parent=0 // pred_check_branch
    %80 = sbr.rel (0) target = $region17
  $region16: #{conv_autoencoder_forward.10} parent=0 // pred_region
    _
  $region17: #{conv_autoencoder_forward.10} parent=0 // pred_fallthru
    _
  // Predicated region
  $region18: #{conv_autoencoder_forward.10} parent=0 // pred_check
    _
  $region19: #{conv_autoencoder_forward.10} parent=0 // pred_check_branch
    %82 = sbr.rel (0) target = $region21
  $region20: #{conv_autoencoder_forward.10} parent=0 // pred_region
    _
  $region21: #{conv_autoencoder_forward.10} parent=0 // pred_fallthru
    _

// kernel: conv_autoencoder_forward.11
$region0: #{conv_autoencoder_forward.11}
  #allocation0 [shape = 'u32[]', space=smem, size = 0x4, offset = 0x4, fixed_abs, tag = 'smem constant byte address 0x4 - core index']
  #allocation1 [shape = 'u32[72,128]{1,0:T(1,128)}', space=vmem, size = 0x9000, scoped, tag = 'internal scratch']
  %s0 = inlined_call_operand.vmem [shape: bf16[8,16], index: 0, kind: input, shape index: {}]
  %s1 = inlined_call_operand.vmem [shape: bf16[16,128], index: 1, kind: input, shape index: {}]
  %s2 = inlined_call_operand.vmem [shape: f32[8,1], index: 2, kind: input, shape index: {}]
  %s3 = inlined_call_operand.vmem [shape: f32[8,128], index: 3, kind: output, shape index: {}]
  %s4 = sld [smem:[#allocation0]]
  $region22: #{conv_autoencoder_forward.11} parent=0
    _
  %s6 = ssub.s32 1, %s4
  %s7 = scalar_select 0, %s6, %s4
  // Predicated region
  $region2: #{conv_autoencoder_forward.11} parent=0 // pred_check
    _
  $region3: #{conv_autoencoder_forward.11} parent=0 // pred_check_branch
    %9 = sbr.rel (0) target = $region5
  $region4: #{conv_autoencoder_forward.11} parent=0 // pred_region
    _
  $region5: #{conv_autoencoder_forward.11} parent=0 // pred_fallthru
    _
  // Predicated region
  $region6: #{conv_autoencoder_forward.11} parent=0 // pred_check
    _
  $region7: #{conv_autoencoder_forward.11} parent=0 // pred_check_branch
    %11 = sbr.rel (0) target = $region9
  $region8: #{conv_autoencoder_forward.11} parent=0 // pred_region
    _
  $region9: #{conv_autoencoder_forward.11} parent=0 // pred_fallthru
    _
  // Predicated region
  $region10: #{conv_autoencoder_forward.11} parent=0 // pred_check
    _
  $region11: #{conv_autoencoder_forward.11} parent=0 // pred_check_branch
    %13 = sbr.rel (0) target = $region13
  $region12: #{conv_autoencoder_forward.11} parent=0 // pred_region
    _
  $region13: #{conv_autoencoder_forward.11} parent=0 // pred_fallthru
    _
  %v15 = vld [vmem:[%s0] sm:$0xf]
  %v16 = vld [vmem:[%s1] sm:$0xf]
  %v17 = vld [vmem:[%s1 + $0x4] sm:$0xf]
  %v18 = vld [vmem:[%s2] sm:$0xff]
  %20 = vset.pattern.permute.xlu0 0
  %21 = vperm.xlu0 %20, %v18
  %v22 = vpop.permute.xlu0 %21
  %v26 = vunpack.c.l.b16 %v16
  %v27 = vunpack.c.l.b16 %v17
  %v28 = vpack.c.b16 %v27, %v26
  %vm30 = vcmask 130048
  %v32 = vsel %vm30, %v15, 0
  %34 = vmatpush.bf16.msra.mxu0 0
  %35 = vmatpush.bf16.msra.mxu0 0
  %36 = vmatpush.bf16.msra.mxu0 0
  %37 = vmatpush.bf16.msra.mxu0 0
  %38 = vmatpush.bf16.msra.mxu0 0
  %39 = vmatpush.bf16.msra.mxu0 0
  %40 = vmatpush.bf16.msra.mxu0 0
  %41 = vmatpush.bf16.msra.mxu0 %v28
  %42 = vmatmul.bf16.gmra.mxu0 %v32
  %v43 = vpop.f32.mrf.mxu0
  %v44 = vadd.f32 %v22, %v43
  %v45 = vpop.f32.mrf.mxu0
  %46 = vdwg.mxu0
  %47 = vst [vmem:[%s3] sm:$0xff] %v44
  // Predicated region
  $region14: #{conv_autoencoder_forward.11} parent=0 // pred_check
    _
  $region15: #{conv_autoencoder_forward.11} parent=0 // pred_check_branch
    %49 = sbr.rel (0) target = $region17
  $region16: #{conv_autoencoder_forward.11} parent=0 // pred_region
    _
  $region17: #{conv_autoencoder_forward.11} parent=0 // pred_fallthru
    _
  // Predicated region
  $region18: #{conv_autoencoder_forward.11} parent=0 // pred_check
    _
  $region19: #{conv_autoencoder_forward.11} parent=0 // pred_check_branch
    %51 = sbr.rel (0) target = $region21
  $region20: #{conv_autoencoder_forward.11} parent=0 // pred_region
    _
  $region21: #{conv_autoencoder_forward.11} parent=0 // pred_fallthru
    _

</llo_original>
